<compile_context>
chip_gen: v7x
topology: tpu7x:2x2x1
jax: 0.10.0
libtpu: 0.0.40
codegen_flags: <defaults>
</compile_context>

<pallas_src>
import math

import jax
import jax.numpy as jnp
from jax.experimental import pallas as pl
from jax.experimental.pallas import tpu as pltpu

LANES = 128
TARGET_TILE_ROWS = 1024          # (1024,128) f32 block = 512 KiB
LOG2 = math.log(2.0)


def _log_cosh_vals(x):
    # x + softplus(-2x) - log(2), numerically stable softplus:
    # softplus(z) = max(z, 0) + log1p(exp(-|z|))
    z = -2.0 * x
    sp = jnp.maximum(z, 0.0) + jnp.log1p(jnp.exp(-jnp.abs(z)))
    return x + sp - jnp.float32(LOG2)


def _log_cosh_partial_kernel(pred_ref, true_ref, out_ref):
    # grid = (n_shards, tiles_per_shard); out block is resident across j and
    # acts as the per-shard (8,128) vector accumulator.
    j = pl.program_id(1)

    @pl.when(j == 0)
    def _():
        out_ref[...] = jnp.zeros_like(out_ref)

    x = pred_ref[...].astype(jnp.float32) - true_ref[...].astype(jnp.float32)
    val = _log_cosh_vals(x)
    # Reduce the (tile_rows,128) tile to a single (8,128) vreg with VPU adds
    # (tile_rows is always a multiple of 8). Final scalar reduce happens in JAX.
    out_ref[...] += val.reshape(-1, 8, LANES).sum(axis=0)


def log_cosh_loss_pallas(y_pred, y_true):
    assert y_pred.shape == y_true.shape, "y_pred / y_true must have same shape"
    n_total = int(y_pred.size)

    pred_flat = y_pred.reshape(-1)
    true_flat = y_true.reshape(-1)

    rows = n_total // LANES
    tile_rows = min(TARGET_TILE_ROWS, (rows // 8) * 8)

    if tile_rows == 0:
        # Input smaller than one (8,128) tile: not worth a kernel launch.
        x = pred_flat.astype(jnp.float32) - true_flat.astype(jnp.float32)
        return jnp.sum(_log_cosh_vals(x)) / jnp.float32(n_total)

    n_tiles = rows // tile_rows
    # Shard across 2 TensorCores (v7x) only when it divides evenly -> no
    # redundant work on single-TC chips (v5e/v6e).
    n_shards = 2 if (n_tiles >= 2 and n_tiles % 2 == 0) else 1
    tiles_per_shard = n_tiles // n_shards
    main_rows = n_tiles * tile_rows
    n_main = main_rows * LANES

    if n_total % LANES == 0:
        # Free reshape of the full array; the grid only touches the first
        # main_rows rows, which are always fully in bounds.
        pred_2d = pred_flat.reshape(-1, LANES)
        true_2d = true_flat.reshape(-1, LANES)
    else:
        # Ragged lane tail (rare): slice the lane-aligned prefix.
        pred_2d = pred_flat[: rows * LANES].reshape(-1, LANES)
        true_2d = true_flat[: rows * LANES].reshape(-1, LANES)

    in_spec = pl.BlockSpec(
        (tile_rows, LANES), lambda i, j: (i * tiles_per_shard + j, 0)
    )

    partials = pl.pallas_call(
        _log_cosh_partial_kernel,
        out_shape=jax.ShapeDtypeStruct((n_shards * 8, LANES), jnp.float32),
        grid_spec=pltpu.PrefetchScalarGridSpec(
            num_scalar_prefetch=0,
            grid=(n_shards, tiles_per_shard),
            in_specs=[in_spec, in_spec],
            out_specs=pl.BlockSpec((8, LANES), lambda i, j: (i, 0)),
        ),
        compiler_params=pltpu.CompilerParams(
            dimension_semantics=("parallel", "arbitrary"),
        ),
    )(pred_2d, true_2d)

    total = jnp.sum(partials)

    if n_main < n_total:
        # Leftover rows (< one tile) + lane tail: tiny, handled in plain JAX.
        xt = (pred_flat[n_main:].astype(jnp.float32)
              - true_flat[n_main:].astype(jnp.float32))
        total = total + jnp.sum(_log_cosh_vals(xt))

    return total / jnp.float32(n_total)


def log_cosh_loss_ref(y_pred, y_true):
    x = y_pred.astype(jnp.float32) - y_true.astype(jnp.float32)
    return jnp.mean(x + jax.nn.softplus(-2.0 * x) - LOG2)


if __name__ == "__main__":
    key = jax.random.PRNGKey(0)
    k1, k2 = jax.random.split(key)
    # Small NCHW-like shapes (e.g. density map prediction vs ground truth).
    y_pred = jax.random.normal(k1, (2, 4, 16, 16), dtype=jnp.float32)
    y_true = jax.random.normal(k2, (2, 4, 16, 16), dtype=jnp.float32)

    loss = jax.block_until_ready(log_cosh_loss_pallas(y_pred, y_true))
    ref = jax.block_until_ready(log_cosh_loss_ref(y_pred, y_true))

    assert jnp.allclose(loss, ref, rtol=1e-5, atol=1e-6), (loss, ref)
    print("KERNEL_OK")
</pallas_src>

<mosaic_0001>
module attributes {stable_mosaic.version = 11 : i64} {
  func.func @_log_cosh_partial_kernel(%arg0: i32, %arg1: i32, %arg2: memref<16x128xf32, #tpu.memory_space<vmem>>, %arg3: memref<16x128xf32, #tpu.memory_space<vmem>>, %arg4: memref<8x128xf32, #tpu.memory_space<vmem>>) attributes {dimension_semantics = [#tpu.dimension_semantics<parallel>, #tpu.dimension_semantics<arbitrary>], iteration_bounds = array<i64: 1, 1>, scalar_prefetch = 0 : i64, scratch_operands = 0 : i64, tpu.core_type = #tpu.core_type<tc>, window_params = [{transform_indices = @transform_0, window_bounds = array<i64: 16, 128>}, {transform_indices = @transform_1, window_bounds = array<i64: 16, 128>}, {transform_indices = @transform_2, window_bounds = array<i64: 8, 128>}]} {
    %c0_i32 = arith.constant 0 : i32
    %0 = arith.cmpi eq, %arg1, %c0_i32 : i32
    %1 = arith.extui %0 : i1 to i32
    %c0_i32_0 = arith.constant 0 : i32
    %2 = arith.cmpi ne, %1, %c0_i32_0 : i32
    scf.if %2 {
      %cst_12 = arith.constant 0.000000e+00 : f32
      %24 = vector.broadcast %cst_12 : f32 to vector<8x128xf32>
      %c0_13 = arith.constant 0 : index
      %c0_14 = arith.constant 0 : index
      %25 = vector.load %arg4[%c0_13, %c0_14] : memref<8x128xf32, #tpu.memory_space<vmem>>, vector<8x128xf32>
      tpu.vector_store %arg4[%c0_13, %c0_14], %24 {strides = array<i32>} : memref<8x128xf32, #tpu.memory_space<vmem>>, vector<8x128xf32>,
    } else {
    }
    %c0 = arith.constant 0 : index
    %c0_1 = arith.constant 0 : index
    %3 = vector.load %arg2[%c0, %c0_1] : memref<16x128xf32, #tpu.memory_space<vmem>>, vector<16x128xf32>
    %c0_2 = arith.constant 0 : index
    %c0_3 = arith.constant 0 : index
    %4 = vector.load %arg3[%c0_2, %c0_3] : memref<16x128xf32, #tpu.memory_space<vmem>>, vector<16x128xf32>
    %5 = arith.subf %3, %4 : vector<16x128xf32>
    %cst = arith.constant -2.000000e+00 : f32
    %6 = vector.broadcast %cst : f32 to vector<16x128xf32>
    %7 = arith.mulf %6, %5 : vector<16x128xf32>
    %cst_4 = arith.constant 0.000000e+00 : f32
    %8 = vector.broadcast %cst_4 : f32 to vector<16x128xf32>
    %9 = arith.maximumf %7, %8 : vector<16x128xf32>
    %10 = math.absf %7 : vector<16x128xf32>
    %cst_5 = arith.constant 0.000000e+00 : f32
    %11 = vector.broadcast %cst_5 : f32 to vector<16x128xf32>
    %12 = arith.subf %11, %10 : vector<16x128xf32>
    %13 = math.exp %12 : vector<16x128xf32>
    %14 = math.log1p %13 : vector<16x128xf32>
    %15 = arith.addf %9, %14 : vector<16x128xf32>
    %16 = arith.addf %5, %15 : vector<16x128xf32>
    %cst_6 = arith.constant 0.693147182 : f32
    %17 = vector.broadcast %cst_6 : f32 to vector<16x128xf32>
    %18 = arith.subf %16, %17 : vector<16x128xf32>
    %c0_7 = arith.constant 0 : index
    %c0_8 = arith.constant 0 : index
    %19 = vector.load %arg4[%c0_7, %c0_8] : memref<8x128xf32, #tpu.memory_space<vmem>>, vector<8x128xf32>
    %20 = vector.shape_cast %18 : vector<16x128xf32> to vector<2x8x128xf32>
    %cst_9 = arith.constant dense<0.000000e+00> : vector<8x128xf32>
    %21 = vector.multi_reduction <add>, %20, %cst_9 [0] : vector<2x8x128xf32> to vector<8x128xf32>
    %22 = arith.addf %19, %21 : vector<8x128xf32>
    %c0_10 = arith.constant 0 : index
    %c0_11 = arith.constant 0 : index
    %23 = vector.load %arg4[%c0_10, %c0_11] : memref<8x128xf32, #tpu.memory_space<vmem>>, vector<8x128xf32>
    tpu.vector_store %arg4[%c0_10, %c0_11], %22 {strides = array<i32>} : memref<8x128xf32, #tpu.memory_space<vmem>>, vector<8x128xf32>,
    return
  }
  func.func @transform_0(%arg0: i32, %arg1: i32) -> (i32, i32) {
    %c1_i32 = arith.constant 1 : i32
    %0 = arith.muli %arg0, %c1_i32 : i32
    %1 = arith.addi %0, %arg1 : i32
    %c0_i32 = arith.constant 0 : i32
    %c0_i32_0 = arith.constant 0 : i32
    return %1, %c0_i32 : i32, i32
  }
  func.func @transform_1(%arg0: i32, %arg1: i32) -> (i32, i32) {
    %c1_i32 = arith.constant 1 : i32
    %0 = arith.muli %arg0, %c1_i32 : i32
    %1 = arith.addi %0, %arg1 : i32
    %c0_i32 = arith.constant 0 : i32
    %c0_i32_0 = arith.constant 0 : i32
    return %1, %c0_i32 : i32, i32
  }
  func.func @transform_2(%arg0: i32, %arg1: i32) -> (i32, i32) {
    %c0_i32 = arith.constant 0 : i32
    %c0_i32_0 = arith.constant 0 : i32
    return %arg0, %c0_i32 : i32, i32
  }
}

</mosaic_0001>

<llo_original>
// kernel: tpu_custom_call.1
$region0: #{tpu_custom_call.1}
  #allocation0 [shape = 'u32[]', space=smem, size = 0x4, offset = 0x4, fixed_abs, tag = 'smem constant byte address 0x4 - core index']
  #allocation1 [shape = 'u32[144,128]{1,0:T(1,128)}', space=vmem, size = 0x12000, scoped, tag = 'internal scratch']
  %s0 = inlined_call_operand.hbm [shape: f32[16,128], index: 0, kind: input, shape index: {}]
  %s1 = inlined_call_operand.hbm [shape: f32[16,128], index: 1, kind: input, shape index: {}]
  %s2 = inlined_call_operand.hbm [shape: f32[8,128], index: 2, kind: output, shape index: {}]
  %s3 = sld [smem:[#allocation0]]
  $region30: #{tpu_custom_call.1} parent=0
    _
  %s5 = ssub.s32 1, %s3
  %s6 = scalar_select 0, %s5, %s3
  $region1: #{tpu_custom_call.1} parent=0
    #allocation2 [shape = 'u8[8192]{0}', space=vmem, size = 0x2000, scoped, tag = 'input window, operand 0, single buffered']
    #allocation3 [shape = 's32[1]{0}', space=sflag, size = 0x4, scoped, tag = 'scoped memory for tpu_custom_call.1']
    #allocation4 [shape = 's32[1]{0}', space=sflag, size = 0x4, scoped, tag = 'scoped memory for tpu_custom_call.1']
    #allocation5 [shape = 'u8[8192]{0}', space=vmem, size = 0x2000, scoped, tag = 'input window, operand 1, single buffered']
    #allocation6 [shape = 's32[1]{0}', space=sflag, size = 0x4, scoped, tag = 'scoped memory for tpu_custom_call.1']
    #allocation7 [shape = 'u8[4096]{0}', space=vmem, size = 0x1000, scoped, tag = 'output window, operand 0, single buffered']
    %7 = vsyncpa [#allocation3], 0
    %8 = vsyncpa [#allocation6], 0
    %9 = vsyncpa [#allocation4], 0
    // Predicated region
    $region2: #{tpu_custom_call.1} parent=1 // pred_check
      _
    $region3: #{tpu_custom_call.1} parent=1 // pred_check_branch
      %11 = sbr.rel (0) target = $region5
    $region4: #{tpu_custom_call.1} parent=1 // pred_region
      %s12 = sadd.s32 0, 0
      %s13 = smul.u32 2, %s12
      %s15 = ssub.s32 256, 256
      %16 = vsyncadd [#allocation3], %s15
      %s17 = smul.addr %s13, 128
      %s18 = scalar_lea.hbm %s0, %s17
      %s19 = sshll.u32 [#allocation2], 4
      %s20 = int_to_ptr.vmem [resolvable:$true] %s19
      %25 = dma.hbm_to_vmem [thread:$0]  %s18, 256, %s20, [#allocation3], 128, 128, 8
    $region5: #{tpu_custom_call.1} parent=1 // pred_fallthru
      _
    // Predicated region
    $region6: #{tpu_custom_call.1} parent=1 // pred_check
      _
    $region7: #{tpu_custom_call.1} parent=1 // pred_check_branch
      %27 = sbr.rel (0) target = $region9
    $region8: #{tpu_custom_call.1} parent=1 // pred_region
      %s28 = sadd.s32 0, 0
      %s29 = smul.u32 2, %s28
      %s31 = ssub.s32 256, 256
      %32 = vsyncadd [#allocation6], %s31
      %s33 = smul.addr %s29, 128
      %s34 = scalar_lea.hbm %s1, %s33
      %s35 = sshll.u32 [#allocation5], 4
      %s36 = int_to_ptr.vmem [resolvable:$true] %s35
      %41 = dma.hbm_to_vmem [thread:$0]  %s34, 256, %s36, [#allocation6], 128, 128, 8
    $region9: #{tpu_custom_call.1} parent=1 // pred_fallthru
      _
    // Predicated region
    $region10: #{tpu_custom_call.1} parent=1 // pred_check
      _
    $region11: #{tpu_custom_call.1} parent=1 // pred_check_branch
      %43 = sbr.rel (0) target = $region13
    $region12: #{tpu_custom_call.1} parent=1 // pred_region
      %44 = dma.done [#allocation3], 256
    $region13: #{tpu_custom_call.1} parent=1 // pred_fallthru
      _
    // Predicated region
    $region14: #{tpu_custom_call.1} parent=1 // pred_check
      _
    $region15: #{tpu_custom_call.1} parent=1 // pred_check_branch
      %46 = sbr.rel (0) target = $region17
    $region16: #{tpu_custom_call.1} parent=1 // pred_region
      %47 = dma.done [#allocation6], 256
    $region17: #{tpu_custom_call.1} parent=1 // pred_fallthru
      _
    %s48 = sadd.s32 0, 0
    %s49 = smul.u32 2, %s48
    %s50 = sadd.s32 0, 0
    %s51 = smul.u32 2, %s50
    %p52 = scmp.eq.s32.totalorder 0, 0
    // Predicated region
    $region18: #{tpu_custom_call.1} parent=1 // pred_check
      %p53 = pneg %p52
    $region19: #{tpu_custom_call.1} parent=1 // pred_check_branch
      %55 = sbr.rel (%p53) target = $region21
    $region20: #{tpu_custom_call.1} parent=1 // pred_region
      %56 = vst [vmem:[#allocation7] sm:$0xff] 0.0
    $region21: #{tpu_custom_call.1} parent=1 // pred_fallthru
      _
    %v57 = vld [vmem:[#allocation2] sm:$0xff]
    %v58 = vld [vmem:[#allocation2 + $0x8] sm:$0xff]
    %v59 = vld [vmem:[#allocation5] sm:$0xff]
    %v60 = vld [vmem:[#allocation5 + $0x8] sm:$0xff]
    %v61 = vsub.f32 %v57, %v59
    %v62 = vsub.f32 %v58, %v60
    %v63 = vmul.f32 %v61, -2.0
    %v64 = vmul.f32 %v62, -2.0
    %v65 = vmax.f32 %v63, 0.0
    %v66 = vmax.f32 %v64, 0.0
    %v67 = vand.u32 2147483647, %v63
    %v68 = vand.u32 2147483647, %v64
    %v69 = vsub.f32 0.0, %v67
    %v70 = vsub.f32 0.0, %v68
    %v71 = vmul.f32 %v69, 1.442695
    %v72 = vpow.pop %v71
    %v73 = vmul.f32 %v70, 1.442695
    %v74 = vpow.pop %v73
    %v75 = vadd.f32 %v72, 1.0
    %v76 = vlog2.pop %v75
    %v77 = vmul.f32 %v76, 0.6931472
    %v78 = vmul.f32 -0.5, %v72
    %v79 = vadd.f32 %v78, 1.0
    %v80 = vmul.f32 %v79, %v72
    %v81 = vand.u32 2147483647, %v72
    %vm82 = vcmp.lt.f32.partialorder %v81, 0.0004427343
    %v83 = vsel %vm82, %v80, %v77
    %v84 = vadd.f32 %v74, 1.0
    %v85 = vlog2.pop %v84
    %v86 = vmul.f32 %v85, 0.6931472
    %v87 = vmul.f32 -0.5, %v74
    %v88 = vadd.f32 %v87, 1.0
    %v89 = vmul.f32 %v88, %v74
    %v90 = vand.u32 2147483647, %v74
    %vm91 = vcmp.lt.f32.partialorder %v90, 0.0004427343
    %v92 = vsel %vm91, %v89, %v86
    %v93 = vadd.f32 %v65, %v83
    %v94 = vadd.f32 %v66, %v92
    %v95 = vadd.f32 %v61, %v93
    %v96 = vadd.f32 %v62, %v94
    %v97 = vsub.f32 %v95, 0.6931472
    %v98 = vsub.f32 %v96, 0.6931472
    %v99 = vld [vmem:[#allocation7] sm:$0xff]
    %v100 = vadd.f32 %v97, %v98
    %v101 = vadd.f32 %v99, %v100
    %102 = vst [vmem:[#allocation7] sm:$0xff] %v101
    // Predicated region
    $region22: #{tpu_custom_call.1} parent=1 // pred_check
      _
    $region23: #{tpu_custom_call.1} parent=1 // pred_check_branch
      %104 = sbr.rel (0) target = $region25
    $region24: #{tpu_custom_call.1} parent=1 // pred_region
      %s106 = ssub.s32 128, 128
      %107 = vsyncadd [#allocation4], %s106
      %s109 = sshll.u32 [#allocation7], 4
      %s110 = int_to_ptr.vmem [resolvable:$true] %s109
      %112 = dma.vmem_to_hbm [thread:$0]  %s110, 128, %s2, [#allocation4]
    $region25: #{tpu_custom_call.1} parent=1 // pred_fallthru
      _
    // Predicated region
    $region26: #{tpu_custom_call.1} parent=1 // pred_check
      _
    $region27: #{tpu_custom_call.1} parent=1 // pred_check_branch
      %114 = sbr.rel (0) target = $region29
    $region28: #{tpu_custom_call.1} parent=1 // pred_region
      %115 = dma.done [#allocation4], 128
    $region29: #{tpu_custom_call.1} parent=1 // pred_fallthru
      _
    %116 = vsyncpa [#allocation3], 1
    %117 = vsyncpa [#allocation6], 1
    %118 = vsyncpa [#allocation4], 1

</llo_original>
